<compile_context>
chip_gen: v7x
topology: tpu7x:2x2x1
jax: 0.10.0
libtpu: 0.0.40
codegen_flags: <defaults>
</compile_context>

<pallas_src>
import jax
import jax.numpy as jnp
from jax.experimental import pallas as pl
from jax.experimental.pallas import tpu as pltpu

_SMOOTH = 1e-07
_SUBLANES = 8
_LANES = 128


def _chip_kind() -> str:
    try:
        return jax.devices()[0].device_kind.lower()
    except Exception:  # defensive: detection failure -> conservative defaults
        return ""


def _num_tensorcores() -> int:
    # The 2-way megacore grid split only pays on v7x (2 TCs/chip).  On 1-TC
    # v5e/v6e it just risks a wasted clamped-tile DMA, so default to 1.
    kind = _chip_kind()
    return 2 if ("v7" in kind or "7x" in kind) else 1


def _max_tile_rows(itemsize: int) -> int:
    # f32: 8192 rows = 4 MiB/input/step on v6e/v7x -> 16 MiB double-buffered
    # across both inputs, inside their 32 MiB scoped-VMEM default.  4096 rows
    # on v5e (16 MiB scoped default) and unknown chips.  Narrow dtypes stream
    # the same bytes with proportionally more rows.
    kind = _chip_kind()
    base = 8192 if ("v6" in kind or "v7" in kind or "7x" in kind) else 4096
    return base * 4 // max(int(itemsize), 1)


def _make_dice_kernel(rows, tile_rows, lanes, steps_per_core, num_row_tiles,
                      has_surplus):
    groups = tile_rows // _SUBLANES
    partial_last = (rows % tile_rows) != 0
    full_tiles = num_row_tiles - 1 if partial_last else num_row_tiles
    valid_tail = rows - full_tiles * tile_rows  # static row count of last tile

    def kernel(pred_ref, true_ref, inter_ref, union_ref):
        c = pl.program_id(0)   # core-split axis ("parallel")
        j = pl.program_id(1)   # streaming axis ("arbitrary")

        @pl.when(j == 0)
        def _init():
            inter_ref[...] = jnp.zeros_like(inter_ref)
            union_ref[...] = jnp.zeros_like(union_ref)

        idx = c * steps_per_core + j   # unclamped row-tile index of this step

        def accumulate_full():
            # In-kernel cast is free on the VPU; inputs stream in native dtype.
            p = pred_ref[...].astype(jnp.float32)
            t = true_ref[...].astype(jnp.float32)
            # (tile_rows,128) -> (groups,8,128) is a free re-view of whole
            # (8,128) vreg tiles; summing axis 0 is pure cross-vreg VPU adds
            # with full, unmasked (8,128) accumulator loads/stores.
            inter_ref[...] += jnp.sum(
                (p * t).reshape(groups, _SUBLANES, lanes), axis=0)
            union_ref[...] += jnp.sum(
                (p + t).reshape(groups, _SUBLANES, lanes), axis=0)

        if not partial_last and not has_surplus:
            # Steady state: every step owns a full, valid tile.  No masking,
            # no branches.
            accumulate_full()
        else:
            @pl.when(idx < full_tiles)
            def _fast():
                accumulate_full()

            if partial_last:
                @pl.when(idx == full_tiles)
                def _tail():
                    # Only the valid rows of the partial last tile take part.
                    # valid_tail is a static Python int -> static slice; the
                    # keepdims reduce + 1-sublane store happens on exactly one
                    # step per kernel call, never in the steady state.
                    p = pred_ref[0:valid_tail, :].astype(jnp.float32)
                    t = true_ref[0:valid_tail, :].astype(jnp.float32)
                    inter_ref[0:1, :] += jnp.sum(p * t, axis=0, keepdims=True)
                    union_ref[0:1, :] += jnp.sum(p + t, axis=0, keepdims=True)
            # Surplus steps from the core split (idx >= num_row_tiles) skip
            # both branches: their clamped DMA lands in VMEM but contributes
            # nothing to the sums.

    return kernel


def dice_loss(y_pred, y_true, *, lanes=_LANES):
    assert y_pred.shape == y_true.shape
    n = int(y_pred.size)

    # Flatten to a lane-dense (rows, 128) slab.  For element counts that are a
    # multiple of 128 (the normal NCHW case) this is a free reshape (no copy).
    flat_p = y_pred.reshape(-1)
    flat_t = y_true.reshape(-1)
    pad = (-n) % lanes
    if pad:
        # Rare path: only the last <128 elements are zero-padded (zeros do not
        # change the sums).
        flat_p = jnp.pad(flat_p, (0, pad))
        flat_t = jnp.pad(flat_t, (0, pad))
    rows = (n + pad) // lanes
    p2 = flat_p.reshape(rows, lanes)
    t2 = flat_t.reshape(rows, lanes)

    itemsizes = [p2.dtype.itemsize, t2.dtype.itemsize]
    # Sublane multiple so block shapes respect native tiling for narrow dtypes
    # ((8,128) f32, (16,128) bf16, (32,128) int8).
    sub_mult = max(_SUBLANES, 32 // max(min(itemsizes), 1))
    max_rows = _max_tile_rows(max(itemsizes))

    num_cores = _num_tensorcores()
    tile_rows = min(max_rows, pl.cdiv(rows, sub_mult) * sub_mult)
    num_row_tiles = pl.cdiv(rows, tile_rows)
    steps = pl.cdiv(num_row_tiles, num_cores)
    has_surplus = num_cores * steps > num_row_tiles

    def in_map(c, j):
        # Clamp so surplus steps never DMA past the end of the array; the
        # kernel skips their contribution.
        return (jnp.minimum(c * steps + j, num_row_tiles - 1), 0)

    def out_map(c, j):
        # Constant over j -> the (8,128) output block stays resident across
        # the streaming axis and acts as the accumulator.
        return (c, 0)

    kernel = _make_dice_kernel(rows, tile_rows, lanes, steps, num_row_tiles,
                               has_surplus)

    part_shape = jax.ShapeDtypeStruct((num_cores * _SUBLANES, lanes),
                                      jnp.float32)
    inter_parts, union_parts = pl.pallas_call(
        kernel,
        out_shape=(part_shape, part_shape),
        grid_spec=pltpu.PrefetchScalarGridSpec(
            num_scalar_prefetch=0,
            grid=(num_cores, steps),
            in_specs=[
                pl.BlockSpec((tile_rows, lanes), in_map),
                pl.BlockSpec((tile_rows, lanes), in_map),
            ],
            out_specs=[
                pl.BlockSpec((_SUBLANES, lanes), out_map),
                pl.BlockSpec((_SUBLANES, lanes), out_map),
            ],
        ),
        compiler_params=pltpu.CompilerParams(
            dimension_semantics=("parallel", "arbitrary"),
        ),
    )(p2, t2)

    # Tiny epilogue: fold the per-core (8,128) lane partials into the scalar
    # loss (matches the PyTorch DiceLoss forward exactly).
    intersection = jnp.sum(inter_parts)
    union = jnp.sum(union_parts)
    dice = (2.0 * intersection + _SMOOTH) / (union + _SMOOTH)
    return 1.0 - dice


def dice_loss_ref(y_pred, y_true):
    smooth = 1e-07
    y_pred = y_pred.astype(jnp.float32)
    y_true = y_true.astype(jnp.float32)
    intersection = jnp.sum(y_true * y_pred)
    union = jnp.sum(y_true) + jnp.sum(y_pred)
    dice = (2.0 * intersection + smooth) / (union + smooth)
    return 1.0 - dice


if __name__ == "__main__":
    key = jax.random.PRNGKey(0)
    k1, k2 = jax.random.split(key)

    # NCHW, small shapes: batch=2, channels=4, spatial=16x16
    y_pred = jax.nn.sigmoid(jax.random.normal(k1, (2, 4, 16, 16), dtype=jnp.float32))
    y_true = (jax.random.uniform(k2, (2, 4, 16, 16)) > 0.5).astype(jnp.float32)

    loss = dice_loss(y_pred, y_true)
    loss = jax.block_until_ready(loss)

    ref = dice_loss_ref(y_pred, y_true)
    assert jnp.allclose(loss, ref, atol=1e-5, rtol=1e-5), (loss, ref)

    print("KERNEL_OK")
</pallas_src>

<mosaic_0001>
module attributes {stable_mosaic.version = 11 : i64} {
  func.func @kernel(%arg0: i32, %arg1: i32, %arg2: memref<16x128xf32, #tpu.memory_space<vmem>>, %arg3: memref<16x128xf32, #tpu.memory_space<vmem>>, %arg4: memref<8x128xf32, #tpu.memory_space<vmem>>, %arg5: memref<8x128xf32, #tpu.memory_space<vmem>>) attributes {dimension_semantics = [#tpu.dimension_semantics<parallel>, #tpu.dimension_semantics<arbitrary>], iteration_bounds = array<i64: 1, 1>, scalar_prefetch = 0 : i64, scratch_operands = 0 : i64, tpu.core_type = #tpu.core_type<tc>, window_params = [{transform_indices = @transform_0, window_bounds = array<i64: 16, 128>}, {transform_indices = @transform_1, window_bounds = array<i64: 16, 128>}, {transform_indices = @transform_2, window_bounds = array<i64: 8, 128>}, {transform_indices = @transform_3, window_bounds = array<i64: 8, 128>}]} {
    %c0_i32 = arith.constant 0 : i32
    %0 = arith.cmpi eq, %arg1, %c0_i32 : i32
    %1 = arith.extui %0 : i1 to i32
    %c0_i32_0 = arith.constant 0 : i32
    %2 = arith.cmpi ne, %1, %c0_i32_0 : i32
    scf.if %2 {
      %cst_13 = arith.constant 0.000000e+00 : f32
      %17 = vector.broadcast %cst_13 : f32 to vector<8x128xf32>
      %c0_14 = arith.constant 0 : index
      %c0_15 = arith.constant 0 : index
      %18 = vector.load %arg4[%c0_14, %c0_15] : memref<8x128xf32, #tpu.memory_space<vmem>>, vector<8x128xf32>
      tpu.vector_store %arg4[%c0_14, %c0_15], %17 {strides = array<i32>} : memref<8x128xf32, #tpu.memory_space<vmem>>, vector<8x128xf32>,
      %cst_16 = arith.constant 0.000000e+00 : f32
      %19 = vector.broadcast %cst_16 : f32 to vector<8x128xf32>
      %c0_17 = arith.constant 0 : index
      %c0_18 = arith.constant 0 : index
      %20 = vector.load %arg5[%c0_17, %c0_18] : memref<8x128xf32, #tpu.memory_space<vmem>>, vector<8x128xf32>
      tpu.vector_store %arg5[%c0_17, %c0_18], %19 {strides = array<i32>} : memref<8x128xf32, #tpu.memory_space<vmem>>, vector<8x128xf32>,
    } else {
    }
    %c0 = arith.constant 0 : index
    %c0_1 = arith.constant 0 : index
    %3 = vector.load %arg2[%c0, %c0_1] : memref<16x128xf32, #tpu.memory_space<vmem>>, vector<16x128xf32>
    %c0_2 = arith.constant 0 : index
    %c0_3 = arith.constant 0 : index
    %4 = vector.load %arg3[%c0_2, %c0_3] : memref<16x128xf32, #tpu.memory_space<vmem>>, vector<16x128xf32>
    %c0_4 = arith.constant 0 : index
    %c0_5 = arith.constant 0 : index
    %5 = vector.load %arg4[%c0_4, %c0_5] : memref<8x128xf32, #tpu.memory_space<vmem>>, vector<8x128xf32>
    %6 = arith.mulf %3, %4 : vector<16x128xf32>
    %7 = vector.shape_cast %6 : vector<16x128xf32> to vector<2x8x128xf32>
    %cst = arith.constant dense<0.000000e+00> : vector<8x128xf32>
    %8 = vector.multi_reduction <add>, %7, %cst [0] : vector<2x8x128xf32> to vector<8x128xf32>
    %9 = arith.addf %5, %8 : vector<8x128xf32>
    %c0_6 = arith.constant 0 : index
    %c0_7 = arith.constant 0 : index
    %10 = vector.load %arg4[%c0_6, %c0_7] : memref<8x128xf32, #tpu.memory_space<vmem>>, vector<8x128xf32>
    tpu.vector_store %arg4[%c0_6, %c0_7], %9 {strides = array<i32>} : memref<8x128xf32, #tpu.memory_space<vmem>>, vector<8x128xf32>,
    %c0_8 = arith.constant 0 : index
    %c0_9 = arith.constant 0 : index
    %11 = vector.load %arg5[%c0_8, %c0_9] : memref<8x128xf32, #tpu.memory_space<vmem>>, vector<8x128xf32>
    %12 = arith.addf %3, %4 : vector<16x128xf32>
    %13 = vector.shape_cast %12 : vector<16x128xf32> to vector<2x8x128xf32>
    %cst_10 = arith.constant dense<0.000000e+00> : vector<8x128xf32>
    %14 = vector.multi_reduction <add>, %13, %cst_10 [0] : vector<2x8x128xf32> to vector<8x128xf32>
    %15 = arith.addf %11, %14 : vector<8x128xf32>
    %c0_11 = arith.constant 0 : index
    %c0_12 = arith.constant 0 : index
    %16 = vector.load %arg5[%c0_11, %c0_12] : memref<8x128xf32, #tpu.memory_space<vmem>>, vector<8x128xf32>
    tpu.vector_store %arg5[%c0_11, %c0_12], %15 {strides = array<i32>} : memref<8x128xf32, #tpu.memory_space<vmem>>, vector<8x128xf32>,
    return
  }
  func.func @transform_0(%arg0: i32, %arg1: i32) -> (i32, i32) {
    %c1_i32 = arith.constant 1 : i32
    %0 = arith.muli %arg0, %c1_i32 : i32
    %1 = arith.addi %0, %arg1 : i32
    %c0_i32 = arith.constant 0 : i32
    %2 = arith.minsi %1, %c0_i32 : i32
    %c0_i32_0 = arith.constant 0 : i32
    %c0_i32_1 = arith.constant 0 : i32
    return %2, %c0_i32_0 : i32, i32
  }
  func.func @transform_1(%arg0: i32, %arg1: i32) -> (i32, i32) {
    %c1_i32 = arith.constant 1 : i32
    %0 = arith.muli %arg0, %c1_i32 : i32
    %1 = arith.addi %0, %arg1 : i32
    %c0_i32 = arith.constant 0 : i32
    %2 = arith.minsi %1, %c0_i32 : i32
    %c0_i32_0 = arith.constant 0 : i32
    %c0_i32_1 = arith.constant 0 : i32
    return %2, %c0_i32_0 : i32, i32
  }
  func.func @transform_2(%arg0: i32, %arg1: i32) -> (i32, i32) {
    %c0_i32 = arith.constant 0 : i32
    %c0_i32_0 = arith.constant 0 : i32
    return %arg0, %c0_i32 : i32, i32
  }
  func.func @transform_3(%arg0: i32, %arg1: i32) -> (i32, i32) {
    %c0_i32 = arith.constant 0 : i32
    %c0_i32_0 = arith.constant 0 : i32
    return %arg0, %c0_i32 : i32, i32
  }
}

</mosaic_0001>

<llo_original>
// kernel: tpu_custom_call.1
$region0: #{tpu_custom_call.1}
  #allocation0 [shape = 'u32[]', space=smem, size = 0x4, offset = 0x4, fixed_abs, tag = 'smem constant byte address 0x4 - core index']
  #allocation1 [shape = 'u32[144,128]{1,0:T(1,128)}', space=vmem, size = 0x12000, scoped, tag = 'internal scratch']
  %s0 = inlined_call_operand.hbm [shape: f32[16,128], index: 0, kind: input, shape index: {}]
  %s1 = inlined_call_operand.hbm [shape: f32[16,128], index: 1, kind: input, shape index: {}]
  %s2 = inlined_call_operand.hbm [shape: f32[8,128], index: 2, kind: output, shape index: {0}]
  %s3 = inlined_call_operand.hbm [shape: f32[8,128], index: 3, kind: output, shape index: {1}]
  %4 = xla_tuple %s2, %s3
  %s5 = sld [smem:[#allocation0]]
  $region38: #{tpu_custom_call.1} parent=0
    _
  %s7 = ssub.s32 1, %s5
  %s8 = scalar_select 0, %s7, %s5
  $region1: #{tpu_custom_call.1} parent=0
    #allocation2 [shape = 'u8[8192]{0}', space=vmem, size = 0x2000, scoped, tag = 'input window, operand 0, single buffered']
    #allocation3 [shape = 's32[1]{0}', space=sflag, size = 0x4, scoped, tag = 'scoped memory for tpu_custom_call.1']
    #allocation4 [shape = 's32[1]{0}', space=sflag, size = 0x4, scoped, tag = 'scoped memory for tpu_custom_call.1']
    #allocation5 [shape = 'u8[8192]{0}', space=vmem, size = 0x2000, scoped, tag = 'input window, operand 1, single buffered']
    #allocation6 [shape = 's32[1]{0}', space=sflag, size = 0x4, scoped, tag = 'scoped memory for tpu_custom_call.1']
    #allocation7 [shape = 'u8[4096]{0}', space=vmem, size = 0x1000, scoped, tag = 'output window, operand 0, single buffered']
    #allocation8 [shape = 'u8[4096]{0}', space=vmem, size = 0x1000, scoped, tag = 'output window, operand 1, single buffered']
    #allocation9 [shape = 's32[1]{0}', space=sflag, size = 0x4, scoped, tag = 'scoped memory for tpu_custom_call.1']
    %9 = vsyncpa [#allocation3], 0
    %10 = vsyncpa [#allocation6], 0
    %11 = vsyncpa [#allocation4], 0
    %12 = vsyncpa [#allocation9], 0
    // Predicated region
    $region2: #{tpu_custom_call.1} parent=1 // pred_check
      _
    $region3: #{tpu_custom_call.1} parent=1 // pred_check_branch
      %14 = sbr.rel (0) target = $region5
    $region4: #{tpu_custom_call.1} parent=1 // pred_region
      %s15 = sadd.s32 0, 0
      %p16 = scmp.lt.s32.totalorder %s15, 0
      %s17 = scalar_select %p16, %s15, 0
      %s18 = smul.u32 2, %s17
      %s20 = ssub.s32 256, 256
      %21 = vsyncadd [#allocation3], %s20
      %s22 = smul.addr %s18, 128
      %s23 = scalar_lea.hbm %s0, %s22
      %s24 = sshll.u32 [#allocation2], 4
      %s25 = int_to_ptr.vmem [resolvable:$true] %s24
      %30 = dma.hbm_to_vmem [thread:$0]  %s23, 256, %s25, [#allocation3], 128, 128, 8
    $region5: #{tpu_custom_call.1} parent=1 // pred_fallthru
      _
    // Predicated region
    $region6: #{tpu_custom_call.1} parent=1 // pred_check
      _
    $region7: #{tpu_custom_call.1} parent=1 // pred_check_branch
      %32 = sbr.rel (0) target = $region9
    $region8: #{tpu_custom_call.1} parent=1 // pred_region
      %s33 = sadd.s32 0, 0
      %p34 = scmp.lt.s32.totalorder %s33, 0
      %s35 = scalar_select %p34, %s33, 0
      %s36 = smul.u32 2, %s35
      %s38 = ssub.s32 256, 256
      %39 = vsyncadd [#allocation6], %s38
      %s40 = smul.addr %s36, 128
      %s41 = scalar_lea.hbm %s1, %s40
      %s42 = sshll.u32 [#allocation5], 4
      %s43 = int_to_ptr.vmem [resolvable:$true] %s42
      %48 = dma.hbm_to_vmem [thread:$0]  %s41, 256, %s43, [#allocation6], 128, 128, 8
    $region9: #{tpu_custom_call.1} parent=1 // pred_fallthru
      _
    // Predicated region
    $region10: #{tpu_custom_call.1} parent=1 // pred_check
      _
    $region11: #{tpu_custom_call.1} parent=1 // pred_check_branch
      %50 = sbr.rel (0) target = $region13
    $region12: #{tpu_custom_call.1} parent=1 // pred_region
      %51 = dma.done [#allocation3], 256
    $region13: #{tpu_custom_call.1} parent=1 // pred_fallthru
      _
    // Predicated region
    $region14: #{tpu_custom_call.1} parent=1 // pred_check
      _
    $region15: #{tpu_custom_call.1} parent=1 // pred_check_branch
      %53 = sbr.rel (0) target = $region17
    $region16: #{tpu_custom_call.1} parent=1 // pred_region
      %54 = dma.done [#allocation6], 256
    $region17: #{tpu_custom_call.1} parent=1 // pred_fallthru
      _
    %s55 = sadd.s32 0, 0
    %p56 = scmp.lt.s32.totalorder %s55, 0
    %s57 = scalar_select %p56, %s55, 0
    %s58 = smul.u32 2, %s57
    %s59 = sadd.s32 0, 0
    %p60 = scmp.lt.s32.totalorder %s59, 0
    %s61 = scalar_select %p60, %s59, 0
    %s62 = smul.u32 2, %s61
    %p63 = scmp.eq.s32.totalorder 0, 0
    // Predicated region
    $region18: #{tpu_custom_call.1} parent=1 // pred_check
      %p64 = pneg %p63
    $region19: #{tpu_custom_call.1} parent=1 // pred_check_branch
      %66 = sbr.rel (%p64) target = $region21
    $region20: #{tpu_custom_call.1} parent=1 // pred_region
      %67 = vst [vmem:[#allocation7] sm:$0xff] 0.0
      %68 = vst [vmem:[#allocation8] sm:$0xff] 0.0
    $region21: #{tpu_custom_call.1} parent=1 // pred_fallthru
      _
    %v69 = vld [vmem:[#allocation2] sm:$0xff]
    %v70 = vld [vmem:[#allocation2 + $0x8] sm:$0xff]
    %v71 = vld [vmem:[#allocation5] sm:$0xff]
    %v72 = vld [vmem:[#allocation5 + $0x8] sm:$0xff]
    %v73 = vld [vmem:[#allocation7] sm:$0xff]
    %v74 = vmul.f32 %v69, %v71
    %v75 = vmul.f32 %v70, %v72
    %v76 = vadd.f32 %v74, %v75
    %v77 = vadd.f32 %v73, %v76
    %78 = vst [vmem:[#allocation7] sm:$0xff] %v77
    %v79 = vld [vmem:[#allocation8] sm:$0xff]
    %v80 = vadd.f32 %v69, %v71
    %v81 = vadd.f32 %v70, %v72
    %v82 = vadd.f32 %v80, %v81
    %v83 = vadd.f32 %v79, %v82
    %84 = vst [vmem:[#allocation8] sm:$0xff] %v83
    // Predicated region
    $region22: #{tpu_custom_call.1} parent=1 // pred_check
      _
    $region23: #{tpu_custom_call.1} parent=1 // pred_check_branch
      %86 = sbr.rel (0) target = $region25
    $region24: #{tpu_custom_call.1} parent=1 // pred_region
      %s88 = ssub.s32 128, 128
      %89 = vsyncadd [#allocation4], %s88
      %s91 = sshll.u32 [#allocation7], 4
      %s92 = int_to_ptr.vmem [resolvable:$true] %s91
      %94 = dma.vmem_to_hbm [thread:$0]  %s92, 128, %s2, [#allocation4]
    $region25: #{tpu_custom_call.1} parent=1 // pred_fallthru
      _
    // Predicated region
    $region26: #{tpu_custom_call.1} parent=1 // pred_check
      _
    $region27: #{tpu_custom_call.1} parent=1 // pred_check_branch
      %96 = sbr.rel (0) target = $region29
    $region28: #{tpu_custom_call.1} parent=1 // pred_region
      %s98 = ssub.s32 128, 128
      %99 = vsyncadd [#allocation9], %s98
      %s101 = sshll.u32 [#allocation8], 4
      %s102 = int_to_ptr.vmem [resolvable:$true] %s101
      %104 = dma.vmem_to_hbm [thread:$0]  %s102, 128, %s3, [#allocation9]
    $region29: #{tpu_custom_call.1} parent=1 // pred_fallthru
      _
    // Predicated region
    $region30: #{tpu_custom_call.1} parent=1 // pred_check
      _
    $region31: #{tpu_custom_call.1} parent=1 // pred_check_branch
      %106 = sbr.rel (0) target = $region33
    $region32: #{tpu_custom_call.1} parent=1 // pred_region
      %107 = dma.done [#allocation4], 128
    $region33: #{tpu_custom_call.1} parent=1 // pred_fallthru
      _
    // Predicated region
    $region34: #{tpu_custom_call.1} parent=1 // pred_check
      _
    $region35: #{tpu_custom_call.1} parent=1 // pred_check_branch
      %109 = sbr.rel (0) target = $region37
    $region36: #{tpu_custom_call.1} parent=1 // pred_region
      %110 = dma.done [#allocation9], 128
    $region37: #{tpu_custom_call.1} parent=1 // pred_fallthru
      _
    %111 = vsyncpa [#allocation3], 1
    %112 = vsyncpa [#allocation6], 1
    %113 = vsyncpa [#allocation4], 1
    %114 = vsyncpa [#allocation9], 1

</llo_original>
